<compile_context>
chip_gen: v5e
topology: v5e:2x2
jax: 0.10.0
libtpu: 0.0.40
codegen_flags: <defaults>
</compile_context>

<pallas_src>
import jax
import jax.numpy as jnp
from jax.experimental import pallas as pl
from jax.experimental.pallas import tpu as pltpu

IN_FEATURES = 32
HIDDEN = 32
OUT3 = 32  # repaired from 10, see TODO(synk) above


def fused_affine_kernel(xT_ref, w_ref, b_ref, oT_ref):
    """One block:  oT = W_f @ xT + b_f.

    xT_ref: (IN_FEATURES, tile_n) bf16   activations, batch on the lane dim
    w_ref : (OUT3, IN_FEATURES)   bf16   fused weight, PyTorch (out, in) layout
    b_ref : (OUT3, 1)             f32    fused bias (lane-broadcast)
    oT_ref: (OUT3, tile_n)        f32
    """
    acc = jnp.dot(w_ref[...], xT_ref[...], preferred_element_type=jnp.float32)
    oT_ref[...] = (acc + b_ref[...]).astype(oT_ref.dtype)


def _round_up(v, m):
    return ((v + m - 1) // m) * m


def mlp_forward(x, w1, b1, w2, b2, w3, b3, *, tile_n=4096, gridless_cutoff=512):
    """x: (N, 32) f32; weights in PyTorch (out, in) layout; biases (out,)."""
    n = x.shape[0]

    # ---- trace-time collapse of the whole forward into a single affine map ----
    # (constants under jit -> folded by XLA; exact algebra in f32, then the
    #  fused weight is cast to bf16 for the MXU; the fused bias stays f32)
    w23 = w2 + w3                                            # (32, 32)
    w_f = (w23 @ w1).astype(jnp.bfloat16)                    # (OUT3, IN_FEATURES)
    b_f = (w23 @ b1 + b2 + b3).reshape(OUT3, 1).astype(jnp.float32)

    # Lane-dense layout: (features, batch).  Wrapper-side transposes are layout
    # plumbing handled by XLA; the kernel's stores become full unmasked vst's.
    xT = x.T.astype(jnp.bfloat16)                            # (IN_FEATURES, n)

    flops = 2 * n * IN_FEATURES * OUT3 + n * OUT3
    bytes_accessed = xT.size * 2 + w_f.size * 2 + b_f.size * 4 + n * OUT3 * 4
    cost = pl.CostEstimate(flops=flops, transcendentals=0,
                           bytes_accessed=bytes_accessed)

    if n <= gridless_cutoff:
        # Overhead-bound tiny-batch regime: no grid, everything VMEM resident.
        vmem = pl.BlockSpec(memory_space=pltpu.MemorySpace.VMEM)
        oT = pl.pallas_call(
            fused_affine_kernel,
            out_shape=jax.ShapeDtypeStruct((OUT3, n), jnp.float32),
            in_specs=[vmem, vmem, vmem],
            out_specs=vmem,
            cost_estimate=cost,
        )(xT, w_f, b_f)
        return oT.T

    # ---- batch-tiled path: grid over batch columns ---------------------------
    # Keep >= 2 grid steps (v7x has 2 TensorCores) and keep the tile a multiple
    # of 128 lanes.  At tile_n=4096 a step moves ~256 KiB in (bf16) + ~512 KiB
    # out (f32); double-buffered ~1.5 MiB -> far inside the default scoped VMEM
    # on every generation (16 MiB v5e, 32 MiB v6e/v7x), so no vmem_limit needed.
    tile_n = max(128, min(tile_n, _round_up(pl.cdiv(n, 2), 128)))
    grid = (pl.cdiv(n, tile_n),)
    # NOTE: if n is not a multiple of tile_n the last block reads past the
    # logical extent; those padded columns never mix into valid outputs (the
    # contraction is over features) and their writeback is discarded.
    oT = pl.pallas_call(
        fused_affine_kernel,
        out_shape=jax.ShapeDtypeStruct((OUT3, n), jnp.float32),
        grid=grid,
        in_specs=[
            pl.BlockSpec((IN_FEATURES, tile_n), lambda i: (0, i)),
            pl.BlockSpec((OUT3, IN_FEATURES), lambda i: (0, 0)),
            pl.BlockSpec((OUT3, 1), lambda i: (0, 0)),
        ],
        out_specs=pl.BlockSpec((OUT3, tile_n), lambda i: (0, i)),
        compiler_params=pltpu.CompilerParams(
            dimension_semantics=("parallel",)),
        cost_estimate=cost,
    )(xT, w_f, b_f)
    return oT.T


def init_linear(key, in_f, out_f):
    # Deterministic init mimicking PyTorch's default U(-1/sqrt(in), 1/sqrt(in)).
    kw, kb = jax.random.split(key)
    bound = 1.0 / jnp.sqrt(jnp.float32(in_f))
    w = jax.random.uniform(kw, (out_f, in_f), jnp.float32, -bound, bound)
    b = jax.random.uniform(kb, (out_f,), jnp.float32, -bound, bound)
    return w, b


def reference(x, w1, b1, w2, b2, w3, b3):
    # Unfused f32 reference: exactly the original module's forward.
    e1 = x @ w1.T + b1
    e2 = e1 @ w2.T + b2
    return e2 + (e1 @ w3.T + b3)


if __name__ == "__main__":
    key = jax.random.PRNGKey(0)
    kx, k1, k2, k3 = jax.random.split(key, 4)

    w1, b1 = init_linear(k1, IN_FEATURES, HIDDEN)
    w2, b2 = init_linear(k2, HIDDEN, HIDDEN)
    w3, b3 = init_linear(k3, HIDDEN, OUT3)

    # bf16 activations/weights feed the MXU -> compare against the f32 unfused
    # reference with a bf16-appropriate tolerance.
    TOL = dict(atol=2e-2, rtol=2e-2)

    # 1) The module's literal shape: x = (2, 32)  (gridless, VMEM-resident path).
    x = jax.random.normal(kx, (2, IN_FEATURES), jnp.float32)
    out = jax.block_until_ready(mlp_forward(x, w1, b1, w2, b2, w3, b3))
    ref = reference(x, w1, b1, w2, b2, w3, b3)
    assert out.shape == (2, OUT3)
    assert jnp.allclose(out, ref, **TOL), "mismatch vs reference (small/gridless)"

    # 2) A larger batch exercising the lane-dense batch-tiled path with >= 2
    #    grid steps (v7x dual-TC): n=1024 -> tile_n auto-shrinks to 512, grid=(2,).
    nb = 1024
    xb = jax.random.normal(kx, (nb, IN_FEATURES), jnp.float32)
    outb = jax.block_until_ready(mlp_forward(xb, w1, b1, w2, b2, w3, b3))
    refb = reference(xb, w1, b1, w2, b2, w3, b3)
    assert outb.shape == (nb, OUT3)
    assert jnp.allclose(outb, refb, **TOL), "mismatch vs reference (tiled)"

    print("KERNEL_OK")
</pallas_src>

<mosaic_0001>
module attributes {stable_mosaic.version = 11 : i64} {
  func.func @fused_affine_kernel(%arg0: memref<32x2xbf16, #tpu.memory_space<vmem>>, %arg1: memref<32x32xbf16, #tpu.memory_space<vmem>>, %arg2: memref<32x1xf32, #tpu.memory_space<vmem>>, %arg3: memref<32x2xf32, #tpu.memory_space<vmem>>) attributes {dimension_semantics = [], scalar_prefetch = 0 : i64, scratch_operands = 0 : i64, tpu.core_type = #tpu.core_type<tc>} {
    %c0 = arith.constant 0 : index
    %c0_0 = arith.constant 0 : index
    %0 = vector.load %arg1[%c0, %c0_0] : memref<32x32xbf16, #tpu.memory_space<vmem>>, vector<32x32xbf16>
    %c0_1 = arith.constant 0 : index
    %c0_2 = arith.constant 0 : index
    %1 = vector.load %arg0[%c0_1, %c0_2] : memref<32x2xbf16, #tpu.memory_space<vmem>>, vector<32x2xbf16>
    %cst = arith.constant dense<0.000000e+00> : vector<32x2xf32>
    %2 = tpu.matmul %0, %1, %cst {dimension_numbers = #tpu.dot_dimension_numbers<[1], [0], [0], [1], [0, 0, 1, 1], [], []>} : vector<32x32xbf16>, vector<32x2xbf16>, vector<32x2xf32> -> vector<32x2xf32>
    %c0_3 = arith.constant 0 : index
    %c0_4 = arith.constant 0 : index
    %3 = vector.load %arg2[%c0_3, %c0_4] : memref<32x1xf32, #tpu.memory_space<vmem>>, vector<32x1xf32>
    %4 = vector.broadcast %3 : vector<32x1xf32> to vector<32x2xf32>
    %5 = arith.addf %2, %4 : vector<32x2xf32>
    %c0_5 = arith.constant 0 : index
    %c0_6 = arith.constant 0 : index
    %6 = vector.load %arg3[%c0_5, %c0_6] : memref<32x2xf32, #tpu.memory_space<vmem>>, vector<32x2xf32>
    tpu.vector_store %arg3[%c0_5, %c0_6], %5 {strides = array<i32>} : memref<32x2xf32, #tpu.memory_space<vmem>>, vector<32x2xf32>,
    return
  }
}

</mosaic_0001>

<llo_original>
// kernel: tpu_custom_call.1
$region0: #{tpu_custom_call.1}
  #allocation0 [shape = 'u32[]', space=smem, size = 0x4, offset = 0x4, fixed_abs, tag = 'smem constant byte address 0x4 - core index']
  #allocation1 [shape = 'u32[72,128]{1,0:T(1,128)}', space=vmem, size = 0x9000, scoped, tag = 'internal scratch']
  %s0 = inlined_call_operand.vmem [shape: bf16[32,2], index: 0, kind: input, shape index: {}]
  %s1 = inlined_call_operand.vmem [shape: bf16[32,32], index: 1, kind: input, shape index: {}]
  %s2 = inlined_call_operand.vmem [shape: f32[32,1], index: 2, kind: input, shape index: {}]
  %s3 = inlined_call_operand.vmem [shape: f32[32,2], index: 3, kind: output, shape index: {}]
  %s4 = sld [smem:[#allocation0]]
  $region22: #{tpu_custom_call.1} parent=0
    _
  %s6 = ssub.s32 1, %s4
  %s7 = scalar_select 0, %s6, %s4
  // Predicated region
  $region2: #{tpu_custom_call.1} parent=0 // pred_check
    _
  $region3: #{tpu_custom_call.1} parent=0 // pred_check_branch
    %9 = sbr.rel (0) target = $region5
  $region4: #{tpu_custom_call.1} parent=0 // pred_region
    _
  $region5: #{tpu_custom_call.1} parent=0 // pred_fallthru
    _
  // Predicated region
  $region6: #{tpu_custom_call.1} parent=0 // pred_check
    _
  $region7: #{tpu_custom_call.1} parent=0 // pred_check_branch
    %11 = sbr.rel (0) target = $region9
  $region8: #{tpu_custom_call.1} parent=0 // pred_region
    _
  $region9: #{tpu_custom_call.1} parent=0 // pred_fallthru
    _
  // Predicated region
  $region10: #{tpu_custom_call.1} parent=0 // pred_check
    _
  $region11: #{tpu_custom_call.1} parent=0 // pred_check_branch
    %13 = sbr.rel (0) target = $region13
  $region12: #{tpu_custom_call.1} parent=0 // pred_region
    _
  $region13: #{tpu_custom_call.1} parent=0 // pred_fallthru
    _
  %v15 = vld [vmem:[%s1] sm:$0xf]
  %v16 = vld [vmem:[%s1 + $0x4] sm:$0xf]
  %v17 = vld [vmem:[%s1 + $0x8] sm:$0xf]
  %v18 = vld [vmem:[%s1 + $0xc] sm:$0xf]
  %v19 = vld [vmem:[%s0] sm:$0xf]
  %v20 = vld [vmem:[%s0 + $0x4] sm:$0xf]
  %v21 = vld [vmem:[%s0 + $0x8] sm:$0xf]
  %v22 = vld [vmem:[%s0 + $0xc] sm:$0xf]
  %v23 = vld [vmem:[%s2] sm:$0xff]
  %v24 = vld [vmem:[%s2 + $0x8] sm:$0xff]
  %v25 = vld [vmem:[%s2 + $0x10] sm:$0xff]
  %v26 = vld [vmem:[%s2 + $0x18] sm:$0xff]
  %28 = vset.pattern.permute.xlu0 0
  %29 = vperm.xlu0 %28, %v23
  %v30 = vpop.permute.xlu0 %29
  %33 = vset.pattern.permute.xlu0 0
  %34 = vperm.xlu0 %33, %v24
  %v35 = vpop.permute.xlu0 %34
  %38 = vset.pattern.permute.xlu0 0
  %39 = vperm.xlu0 %38, %v25
  %v40 = vpop.permute.xlu0 %39
  %43 = vset.pattern.permute.xlu0 0
  %44 = vperm.xlu0 %43, %v26
  %v45 = vpop.permute.xlu0 %44
  %v51 = vunpack.c.l.b16 %v15
  %v52 = vunpack.c.l.b16 %v16
  %v53 = vunpack.c.l.b16 %v17
  %v54 = vunpack.c.l.b16 %v18
  %v55 = vpack.c.b16 %v52, %v51
  %v56 = vpack.c.b16 %v54, %v53
  %v61 = vunpack.c.l.b16 %v19
  %v62 = vunpack.c.l.b16 %v20
  %v63 = vunpack.c.l.b16 %v21
  %v64 = vunpack.c.l.b16 %v22
  %v65 = vpack.c.b16 %v62, %v61
  %v66 = vpack.c.b16 %v64, %v63
  %vm69 = vcmask 261120
  %v71 = vsel %vm69, %v55, 0
  %v74 = vsel %vm69, %v56, 0
  %76 = vmatpush.bf16.msra.mxu0 0
  %77 = vmatpush.bf16.msra.mxu0 0
  %78 = vmatpush.bf16.msra.mxu0 0
  %79 = vmatpush.bf16.msra.mxu0 0
  %80 = vmatpush.bf16.msra.mxu0 0
  %81 = vmatpush.bf16.msra.mxu0 0
  %82 = vmatpush.bf16.msra.mxu0 %v66
  %83 = vmatpush.bf16.msra.mxu0 %v65
  %84 = vmatmul.bf16.gmra.mxu0 %v71
  %v85 = vpop.f32.mrf.mxu0
  %v86 = vadd.f32 %v30, %v85
  %v87 = vpop.f32.mrf.mxu0
  %v88 = vadd.f32 %v35, %v87
  %89 = vmatmul.bf16.gmra.mxu0 %v74
  %v90 = vpop.f32.mrf.mxu0
  %v91 = vadd.f32 %v40, %v90
  %v92 = vpop.f32.mrf.mxu0
  %v93 = vadd.f32 %v45, %v92
  %94 = vdwg.mxu0
  %vm95 = vcmask 15360
  %96 = vst.msk [vmem:[%s3] sm:$0xff] %vm95, %v86
  %97 = vst.msk [vmem:[%s3 + $0x8] sm:$0xff] %vm95, %v88
  %98 = vst.msk [vmem:[%s3 + $0x10] sm:$0xff] %vm95, %v91
  %99 = vst.msk [vmem:[%s3 + $0x18] sm:$0xff] %vm95, %v93
  // Predicated region
  $region14: #{tpu_custom_call.1} parent=0 // pred_check
    _
  $region15: #{tpu_custom_call.1} parent=0 // pred_check_branch
    %101 = sbr.rel (0) target = $region17
  $region16: #{tpu_custom_call.1} parent=0 // pred_region
    _
  $region17: #{tpu_custom_call.1} parent=0 // pred_fallthru
    _
  // Predicated region
  $region18: #{tpu_custom_call.1} parent=0 // pred_check
    _
  $region19: #{tpu_custom_call.1} parent=0 // pred_check_branch
    %103 = sbr.rel (0) target = $region21
  $region20: #{tpu_custom_call.1} parent=0 // pred_region
    _
  $region21: #{tpu_custom_call.1} parent=0 // pred_fallthru
    _

</llo_original>
